<compile_context>
chip_gen: v6e
topology: v6e:2x2x1
jax: 0.10.0
libtpu: 0.0.40
codegen_flags: <defaults>
</compile_context>

<pallas_src>
import functools

import jax
import jax.numpy as jnp
from jax.experimental import pallas as pl
from jax.experimental.pallas import tpu as pltpu


# --------------------------------------------------------------------------
# Generation-aware VMEM budgets (review: don't hardcode v7x's 64 MiB).
# --------------------------------------------------------------------------

def _vmem_budgets():
    cap = 64 * 1024 * 1024                     # conservative default (v7x)
    try:
        info = pltpu.get_tpu_info()
        cap = int(getattr(info, "vmem_capacity_bytes", cap) or cap)
    except Exception:                          # non-TPU tracing / older jax
        pass
    limit = int(cap * 0.8)                     # vmem_limit_bytes: 80% physical
    step = int(limit * 0.4)                    # double-buffered per-step cap
    return limit, step


_VMEM_LIMIT_BYTES, _VMEM_STEP_BUDGET = _vmem_budgets()
_MIN_GRID_STEPS = 4                            # pipelining + v7x megacore
_MIN_LANES = 128                               # lane-density gate for Pallas


# ----------------------------- small helpers --------------------------------

def _prod(xs):
    out = 1
    for s in xs:
        out *= int(s)
    return out


def _round_up(x, m):
    return ((int(x) + m - 1) // m) * m


def _sublane_multiple(dtype):
    item = jnp.dtype(dtype).itemsize
    return max(8, 32 // min(item, 4))          # f32->8, bf16->16, int8->32


def _padded_block_bytes(block_shape, dtype):
    """VMEM footprint of one block, including (sublane, lane) tile padding."""
    dims = [max(1, int(d)) for d in block_shape]
    while len(dims) < 2:
        dims = [1] + dims
    item = jnp.dtype(dtype).itemsize
    lead = _prod(dims[:-2])
    return (lead * _round_up(dims[-2], _sublane_multiple(dtype))
            * _round_up(dims[-1], 128) * item)


def _acc_dtype_for(dtype):
    """Accumulate 16-bit floats in f32 (v5e has no bf16 VALU); keep the rest."""
    dt = jnp.dtype(dtype)
    if jnp.issubdtype(dt, jnp.floating) and jnp.finfo(dt).bits < 32:
        return jnp.dtype(jnp.float32)
    return dt


def _pick_batch_block(n, fits_fn, steps_per_batch=1, min_steps=_MIN_GRID_STEPS):
    """Largest batch block nb (divisor of n) whose double-buffered footprint
    fits and that keeps the grid at >= min_steps; if min_steps is unreachable,
    maximise step count.  Returns None if nothing fits (caller falls back)."""
    fitting = [d for d in range(1, n + 1) if n % d == 0 and fits_fn(d)]
    if not fitting:
        return None
    ok = [d for d in fitting if (n // d) * steps_per_batch >= min_steps]
    return max(ok) if ok else min(fitting)


def _pick_lane_block(lane_len, n_batch, fits_fn, min_steps=_MIN_GRID_STEPS):
    """Lane-axis block: a multiple of 128 dividing lane_len (or lane_len
    itself).  Prefer the largest block that still gives the grid enough steps
    when the batch axis alone cannot."""
    cands = [d for d in range(128, lane_len + 1, 128) if lane_len % d == 0]
    if not cands:
        cands = [lane_len]
    elif lane_len not in cands:
        cands.append(lane_len)
    cands = sorted(set(cands), reverse=True)
    cands = [c for c in cands if fits_fn(c)]
    if not cands:
        return None
    want_chunks = max(1, -(-min_steps // max(n_batch, 1)))
    for c in cands:
        if lane_len // c >= want_chunks:
            return c
    return cands[-1]


def _crop_ref(x, target_spatial):
    """Plain-JAX `Crop` (reference + fallback for configs the kernels skip)."""
    sp = tuple(int(s) for s in x.shape[2:])
    sl = tuple(slice(0, min(a, int(b))) for a, b in zip(sp, target_spatial))
    x = x[(slice(None), slice(None)) + sl]
    pad = [(0, 0), (0, 0)] + [(0, max(0, int(t) - int(s)))
                              for s, t in zip(x.shape[2:], target_spatial)]
    return jnp.pad(x, pad)


def _resize_trailing_spatial(x, target_spatial):
    """Crop / zero-pad every spatial dim EXCEPT the first to the target
    (cheap XLA slice+pad); the leading spatial dim is resized inside the
    kernel as a contiguous window of the flattened (lane-dense) axis."""
    sp = tuple(int(s) for s in x.shape[2:])
    if len(sp) <= 1:
        return x
    sl = [slice(None), slice(None), slice(None)]
    pad = [(0, 0), (0, 0), (0, 0)]
    changed = False
    for s, t in zip(sp[1:], tuple(int(v) for v in target_spatial[1:])):
        sl.append(slice(0, min(s, t)))
        pad.append((0, max(0, t - s)))
        changed = changed or (s != t)
    if not changed:
        return x
    return jnp.pad(x[tuple(sl)], pad)


def _spatial_resize_plan(shapes, force_resize):
    target = tuple(shapes[0][2:])
    flags = []
    for shp in shapes:
        sp = tuple(shp[2:])
        flags.append(bool(force_resize) and len(sp) > 0
                     and sp != (1,) * len(sp) and sp != target)
    return target, flags


# ----------------------------- Pallas kernels --------------------------------

def _concat_kernel(*refs, slots, l_out):
    """Fused crop/zero-pad + channel concat on the lane-dense (N, C, H*W)
    layout.  Per input: one wide store into its channel slot plus (at most)
    one tail zero strip — every output element written exactly once."""
    *x_refs, o_ref = refs
    for ref, (off, ci, eff) in zip(x_refs, slots):
        o_ref[:, off:off + ci, :eff] = ref[:, :, :eff].astype(o_ref.dtype)
        if eff < l_out:
            o_ref[:, off:off + ci, eff:] = jnp.zeros(
                (int(ref.shape[0]), ci, l_out - eff), o_ref.dtype)


def _reduce_flat_kernel(*refs, op, metas, acc_dtype):
    """Broadcast sum/mul on the lane-dense layout (no resize needed): all
    operands combined in registers, one full-block store."""
    *x_refs, o_ref = refs

    def combine(a, b):
        if a is None:
            return b
        return a + b if op == "sum" else a * b

    acc = None
    for ref, meta in zip(x_refs, metas):
        if meta["kind"] == "vmem":
            acc = combine(acc, ref[...].astype(acc_dtype))
    if acc is None:
        acc = (jnp.zeros if op == "sum" else jnp.ones)(o_ref.shape, acc_dtype)
    acc = jnp.broadcast_to(acc, o_ref.shape)
    for ref, meta in zip(x_refs, metas):
        if meta["kind"] == "smem":                 # global scalar
            acc = combine(acc, ref[0].astype(acc_dtype))
    o_ref[...] = acc.astype(o_ref.dtype)


def _reduce_resize_kernel(*refs, op, metas, acc_dtype, l_out, cuts):
    """Fused crop/zero-pad + broadcast sum/mul.  The flattened lane axis is
    split at the static pad boundaries; each region is combined in registers
    and stored once — no VMEM scratch canvas, each element written once."""
    *x_refs, o_ref = refs
    nb, c_out = int(o_ref.shape[0]), int(o_ref.shape[1])

    def combine(a, b):
        if a is None:
            return b
        return a + b if op == "sum" else a * b

    scal = None                                    # global scalars from SMEM
    for ref, meta in zip(x_refs, metas):
        if meta["kind"] == "smem":
            scal = combine(scal, ref[0].astype(acc_dtype))

    for lo, hi in zip(cuts[:-1], cuts[1:]):
        width = hi - lo
        acc = None
        for ref, meta in zip(x_refs, metas):
            if meta["kind"] != "vmem":
                continue
            if meta["lane_bcast"]:
                v = ref[...].astype(acc_dtype)
            elif meta["eff"] <= lo:                # zero-padded region
                v = jnp.zeros((1, 1, 1), acc_dtype)
            else:
                v = ref[:, :, lo:hi].astype(acc_dtype)
            acc = combine(acc, v)
        if acc is None:
            acc = (jnp.zeros if op == "sum" else jnp.ones)(
                (nb, c_out, width), acc_dtype)
        acc = jnp.broadcast_to(acc, (nb, c_out, width))
        if scal is not None:
            acc = combine(acc, scal)
        o_ref[:, :, lo:hi] = acc.astype(o_ref.dtype)


# ----------------------------- op wrappers -----------------------------------

def _combine_concat(inputs, force_resize=True):
    inputs = [jnp.asarray(x) for x in inputs]
    shapes = [tuple(int(s) for s in x.shape) for x in inputs]
    out_dtype = jnp.result_type(*inputs)
    target, resize_flags = _spatial_resize_plan(shapes, force_resize)

    def _plain():
        xs = [_crop_ref(x, target) if rz else x
              for x, rz in zip(inputs, resize_flags)]
        return jnp.concatenate([x.astype(out_dtype) for x in xs], axis=1)

    if not any(resize_flags):
        # Pure channel concat is a copy XLA already streams at full HBM BW.
        return jnp.concatenate([x.astype(out_dtype) for x in inputs], axis=1)

    rank = len(shapes[0])
    if rank < 3 or any(len(s) != rank for s in shapes):
        return _plain()        # TODO(synk): mixed-rank concat left to XLA.
    n = shapes[0][0]
    if any(s[0] != n for s in shapes):
        return _plain()

    out_sp = tuple(target)
    trailing = _prod(out_sp[1:]) if len(out_sp) > 1 else 1
    l_out = int(out_sp[0]) * trailing
    if l_out < _MIN_LANES:
        # Lane-sparse: XLA pad+concat beats a masked-store Pallas kernel.
        return _plain()
    for s, rz in zip(shapes, resize_flags):
        if not rz and tuple(s[2:]) != out_sp:
            return _plain()

    # Flatten to lane-dense (N, C, H*W): trailing spatial resized in the
    # wrapper, leading spatial dim fused as a contiguous lane window.
    flat, slots, offs = [], [], 0
    for x, s, rz in zip(inputs, shapes, resize_flags):
        c = int(s[1])
        xr = _resize_trailing_spatial(x, target) if rz else x
        li = int(xr.shape[2]) * trailing
        flat.append(xr.reshape((n, c, li)))
        slots.append((offs, c, min(li, l_out)))
        offs += c
    c_total = offs
    out_shape = (n, c_total) + out_sp

    def fits(nb):
        total = _padded_block_bytes((nb, c_total, l_out), out_dtype)
        for xf in flat:
            total += _padded_block_bytes((nb,) + tuple(xf.shape[1:]), xf.dtype)
        return 2 * total <= _VMEM_STEP_BUDGET

    nb = _pick_batch_block(n, fits)
    if nb is None:
        return _plain()        # even the minimal block does not fit VMEM

    in_specs = [pl.BlockSpec((nb,) + tuple(int(v) for v in xf.shape[1:]),
                             lambda b: (b, 0, 0)) for xf in flat]
    out_spec = pl.BlockSpec((nb, c_total, l_out), lambda b: (b, 0, 0))
    kernel = functools.partial(_concat_kernel, slots=tuple(slots), l_out=l_out)
    out = pl.pallas_call(
        kernel,
        out_shape=jax.ShapeDtypeStruct((n, c_total, l_out), out_dtype),
        grid=(n // nb,),
        in_specs=in_specs,
        out_specs=out_spec,
        compiler_params=pltpu.CompilerParams(
            dimension_semantics=("parallel",),
            vmem_limit_bytes=_VMEM_LIMIT_BYTES),
    )(*flat)
    return out.reshape(out_shape)


def _combine_reduce(inputs, op, force_resize=True):
    inputs = [jnp.asarray(x) for x in inputs]
    shapes = [tuple(int(s) for s in x.shape) for x in inputs]
    out_dtype = jnp.result_type(*inputs)
    acc_dtype = _acc_dtype_for(out_dtype)
    target, resize_flags = _spatial_resize_plan(shapes, force_resize)

    def _plain():
        xs = [_crop_ref(x, target) if rz else x
              for x, rz in zip(inputs, resize_flags)]
        acc = xs[0]
        for x in xs[1:]:
            acc = acc + x if op == "sum" else acc * x
        return acc.astype(out_dtype)

    rank = len(shapes[0])
    if rank < 3 or len(inputs) < 2 or any(len(s) != rank for s in shapes):
        return _plain()        # TODO(synk): mixed-rank broadcasting left to XLA.

    resized_shapes = [tuple(s[:2]) + (target if rz else tuple(s[2:]))
                      for s, rz in zip(shapes, resize_flags)]
    out_shape = tuple(int(v) for v in jnp.broadcast_shapes(*resized_shapes))
    n_out, c_out = out_shape[0], out_shape[1]
    out_sp = tuple(out_shape[2:])
    trailing = _prod(out_sp[1:]) if len(out_sp) > 1 else 1
    l_out = int(out_sp[0]) * trailing
    if l_out < _MIN_LANES:
        return _plain()        # lane-sparse: XLA elementwise is already optimal

    # ---- classify operands ---------------------------------------------------
    plan, ok = [], True
    for x, shp, rz in zip(inputs, shapes, resize_flags):
        b, c = int(shp[0]), int(shp[1])
        sp = tuple(shp[2:])
        if _prod(shp[1:]) == 1 and not rz:
            if (b == 1 and jnp.issubdtype(jnp.dtype(x.dtype), jnp.floating)
                    and jnp.issubdtype(jnp.dtype(out_dtype), jnp.floating)):
                plan.append(dict(kind="smem",
                                 array=x.reshape((1,)).astype(jnp.float32)))
            else:
                # Per-sample scalars: tiny (nb,1,1) VMEM block, combined with a
                # single broadcast VPU op (no per-row slice + concat).
                plan.append(dict(kind="vmem", array=x.reshape((b, 1, 1)),
                                 batch=b, lane_bcast=True, eff=l_out,
                                 resize=False))
            continue
        if c not in (1, c_out) or b not in (1, n_out):
            ok = False
            break
        if rz:
            xr = _resize_trailing_spatial(x, target)
            li = int(xr.shape[2]) * trailing
            plan.append(dict(kind="vmem", array=xr.reshape((b, c, li)),
                             batch=b, lane_bcast=False,
                             eff=min(li, l_out), resize=True))
        elif sp == out_sp:
            plan.append(dict(kind="vmem", array=x.reshape((b, c, l_out)),
                             batch=b, lane_bcast=False, eff=l_out,
                             resize=False))
        elif sp == (1,) * len(sp):
            plan.append(dict(kind="vmem", array=x.reshape((b, c, 1)),
                             batch=b, lane_bcast=True, eff=l_out,
                             resize=False))
        else:
            ok = False         # partial spatial broadcast
            break
    if not ok:
        return _plain()        # TODO(synk): partial spatial broadcast not fused.

    any_resize = any(p.get("resize", False) for p in plan
                     if p["kind"] == "vmem")
    call_out_shape = (n_out, c_out, l_out)

    if not any_resize:
        # ---- Case A: no resize; 2-D grid (batch, lane chunks) ----------------
        def fits(nb, lb):
            total = _padded_block_bytes((nb, c_out, lb), out_dtype)
            for p in plan:
                if p["kind"] != "vmem":
                    continue
                bb = nb if p["batch"] == n_out else 1
                ll = 1 if p["lane_bcast"] else lb
                total += _padded_block_bytes(
                    (bb, int(p["array"].shape[1]), ll), p["array"].dtype)
            return 2 * total <= _VMEM_STEP_BUDGET

        lb = _pick_lane_block(l_out, n_out, lambda c: fits(1, c))
        if lb is None:
            return _plain()
        nb = _pick_batch_block(n_out, lambda d: fits(d, lb),
                               steps_per_batch=l_out // lb)
        if nb is None:
            return _plain()

        operands, in_specs, metas = [], [], []
        for p in plan:
            operands.append(p["array"])
            if p["kind"] == "smem":
                in_specs.append(pl.BlockSpec(memory_space=pltpu.MemorySpace.SMEM))
                metas.append(dict(kind="smem"))
                continue
            batched = p["batch"] == n_out
            bb = nb if batched else 1
            ci = int(p["array"].shape[1])
            if p["lane_bcast"]:
                block = (bb, ci, 1)
                imap = (lambda b, j, _bt=batched: ((b if _bt else 0), 0, 0))
            else:
                block = (bb, ci, lb)
                imap = (lambda b, j, _bt=batched: ((b if _bt else 0), 0, j))
            in_specs.append(pl.BlockSpec(block, imap))
            metas.append(dict(kind="vmem"))
        out_spec = pl.BlockSpec((nb, c_out, lb), lambda b, j: (b, 0, j))
        kernel = functools.partial(_reduce_flat_kernel, op=op,
                                   metas=tuple(metas), acc_dtype=acc_dtype)
        out = pl.pallas_call(
            kernel,
            out_shape=jax.ShapeDtypeStruct(call_out_shape, out_dtype),
            grid=(n_out // nb, l_out // lb),
            in_specs=in_specs,
            out_specs=out_spec,
            compiler_params=pltpu.CompilerParams(
                dimension_semantics=("parallel", "parallel"),
                vmem_limit_bytes=_VMEM_LIMIT_BYTES),
        )(*operands)
        return out.reshape(out_shape)

    # ---- Case B: fused crop/pad; 1-D batch grid, region-split lane stores ----
    def fits(nb):
        total = _padded_block_bytes((nb, c_out, l_out), out_dtype)
        for p in plan:
            if p["kind"] != "vmem":
                continue
            bb = nb if p["batch"] == n_out else 1
            total += _padded_block_bytes((bb,) + tuple(p["array"].shape[1:]),
                                         p["array"].dtype)
        return 2 * total <= _VMEM_STEP_BUDGET

    nb = _pick_batch_block(n_out, fits)
    if nb is None:
        return _plain()

    cuts = sorted({0, l_out} | {int(p["eff"]) for p in plan
                                if p["kind"] == "vmem" and p["resize"]
                                and 0 < p["eff"] < l_out})
    operands, in_specs, metas = [], [], []
    for p in plan:
        operands.append(p["array"])
        if p["kind"] == "smem":
            in_specs.append(pl.BlockSpec(memory_space=pltpu.MemorySpace.SMEM))
            metas.append(dict(kind="smem"))
            continue
        batched = p["batch"] == n_out
        bb = nb if batched else 1
        block = (bb,) + tuple(int(v) for v in p["array"].shape[1:])
        imap = (lambda b, _bt=batched: ((b if _bt else 0), 0, 0))
        in_specs.append(pl.BlockSpec(block, imap))
        metas.append(dict(kind="vmem", lane_bcast=bool(p["lane_bcast"]),
                          eff=int(p["eff"])))
    out_spec = pl.BlockSpec((nb, c_out, l_out), lambda b: (b, 0, 0))
    kernel = functools.partial(_reduce_resize_kernel, op=op,
                               metas=tuple(metas), acc_dtype=acc_dtype,
                               l_out=l_out, cuts=tuple(cuts))
    out = pl.pallas_call(
        kernel,
        out_shape=jax.ShapeDtypeStruct(call_out_shape, out_dtype),
        grid=(n_out // nb,),
        in_specs=in_specs,
        out_specs=out_spec,
        compiler_params=pltpu.CompilerParams(
            dimension_semantics=("parallel",),
            vmem_limit_bytes=_VMEM_LIMIT_BYTES),
    )(*operands)
    return out.reshape(out_shape)


# ----------------------------- module -----------------------------------------

class Combine:
    """JAX/Pallas re-implementation of batchflow Combine (concat / sum / mul)."""

    _ALIASES = {
        "concat": ("concat", "cat", "|"),
        "sum": ("sum", "plus", "+"),
        "mul": ("multi", "mul", "*"),
    }

    def __init__(self, inputs=None, op="concat", force_resize=None,
                 leading_index=0, **kwargs):
        del inputs, kwargs
        self.name = op
        self.idx = leading_index
        self._op = None
        for canonical, aliases in self._ALIASES.items():
            if op in aliases:
                self._op = canonical
        if self._op is None:
            # TODO(synk): 'avg', 'softsum', 'attention' need batchflow ConvBlock /
            # torch.mean-over-list semantics and are not ported.
            raise ValueError(f"Unsupported op {op!r} in this Pallas port.")
        self.force_resize = True if force_resize is None else force_resize

    def __call__(self, inputs):
        inputs = list(inputs)
        if self.idx != 0:
            inputs[0], inputs[self.idx] = inputs[self.idx], inputs[0]
        if self._op == "concat":
            return _combine_concat(inputs, self.force_resize)
        return _combine_reduce(inputs, self._op, self.force_resize)


# ----------------------------- pure-JAX reference ----------------------------

def _combine_ref(inputs, op, force_resize=True):
    inputs = [jnp.asarray(x) for x in inputs]
    if force_resize:
        target = tuple(inputs[0].shape[2:])
        resized = []
        for x in inputs:
            sp = tuple(x.shape[2:])
            if len(sp) > 0 and sp != (1,) * len(sp) and sp != target:
                x = _crop_ref(x, target)
            resized.append(x)
        inputs = resized
    if op == "concat":
        dt = jnp.result_type(*inputs)
        return jnp.concatenate([x.astype(dt) for x in inputs], axis=1)
    acc = inputs[0]
    for x in inputs[1:]:
        acc = acc + x if op == "sum" else acc * x
    return acc


# ----------------------------- demo ------------------------------------------

if __name__ == "__main__":
    key = jax.random.PRNGKey(0)
    ks = jax.random.split(key, 8)

    x0 = jax.random.normal(ks[0], (2, 4, 16, 16), jnp.float32)
    x1 = jax.random.normal(ks[1], (2, 3, 12, 20), jnp.float32)  # H pad fused, W crop in wrapper
    x2 = jax.random.normal(ks[2], (2, 5, 16, 16), jnp.float32)

    # fused crop/pad + concat (Pallas, lane-dense, 2 grid steps)
    out_cat = Combine(op="concat")([x0, x1, x2])
    jax.block_until_ready(out_cat)
    assert out_cat.shape == (2, 12, 16, 16)
    assert jnp.allclose(out_cat, _combine_ref([x0, x1, x2], "concat"), atol=1e-6)

    # no-resize concat: plain XLA copy fast path
    out_cat2 = Combine(op="concat")([x0, x2])
    jax.block_until_ready(out_cat2)
    assert out_cat2.shape == (2, 9, 16, 16)
    assert jnp.allclose(out_cat2, _combine_ref([x0, x2], "concat"), atol=1e-6)

    # fused crop/pad + sum / mul with broadcasting and scalars
    y1 = jax.random.normal(ks[3], (2, 4, 20, 12), jnp.float32)  # crop H fused, pad W in wrapper
    y3 = jax.random.normal(ks[4], (2, 4, 12, 16), jnp.float32)  # pad H fused -> lane region split
    y2 = jax.random.normal(ks[5], (2, 1, 1, 1), jnp.float32)    # per-sample scalar (tiny VMEM blk)
    g = jax.random.normal(ks[6], (1, 1, 1, 1), jnp.float32)     # global scalar (SMEM)

    out_sum = Combine(op="sum")([x0, y1, y3, y2, g])
    jax.block_until_ready(out_sum)
    assert out_sum.shape == (2, 4, 16, 16)
    assert jnp.allclose(out_sum, _combine_ref([x0, y1, y3, y2, g], "sum"), atol=1e-4)

    out_mul = Combine(op="mul")([x0, y1, y3, y2, g])
    jax.block_until_ready(out_mul)
    assert jnp.allclose(out_mul, _combine_ref([x0, y1, y3, y2, g], "mul"), atol=1e-4)

    # lane-dense no-resize path: channel broadcast + scalars, (batch x lane) grid
    z1 = jax.random.normal(ks[7], (2, 1, 16, 16), jnp.float32)
    out_flat = Combine(op="sum")([x0, z1, y2, g])
    jax.block_until_ready(out_flat)
    assert out_flat.shape == (2, 4, 16, 16)
    assert jnp.allclose(out_flat, _combine_ref([x0, z1, y2, g], "sum"), atol=1e-4)

    # bf16 inputs accumulate in f32 in-kernel, single cast on store
    x0b = x0.astype(jnp.bfloat16)
    z1b = z1.astype(jnp.bfloat16)
    out_bf16 = Combine(op="sum")([x0b, z1b])
    jax.block_until_ready(out_bf16)
    ref_bf16 = (x0b.astype(jnp.float32) + z1b.astype(jnp.float32)).astype(jnp.bfloat16)
    assert out_bf16.dtype == jnp.bfloat16
    assert jnp.allclose(out_bf16.astype(jnp.float32), ref_bf16.astype(jnp.float32),
                        atol=1e-2)

    print("KERNEL_OK")
</pallas_src>

<mosaic_0001>
module attributes {stable_mosaic.version = 11 : i64} {
  func.func @_concat_kernel(%arg0: i32, %arg1: memref<1x4x256xf32, #tpu.memory_space<vmem>>, %arg2: memref<1x3x192xf32, #tpu.memory_space<vmem>>, %arg3: memref<1x5x256xf32, #tpu.memory_space<vmem>>, %arg4: memref<1x12x256xf32, #tpu.memory_space<vmem>>) attributes {dimension_semantics = [#tpu.dimension_semantics<parallel>], iteration_bounds = array<i64: 2>, scalar_prefetch = 0 : i64, scratch_operands = 0 : i64, tpu.core_type = #tpu.core_type<tc>, window_params = [{transform_indices = @transform_0, window_bounds = array<i64: 1, 4, 256>}, {transform_indices = @transform_1, window_bounds = array<i64: 1, 3, 192>}, {transform_indices = @transform_2, window_bounds = array<i64: 1, 5, 256>}, {transform_indices = @transform_3, window_bounds = array<i64: 1, 12, 256>}]} {
    %c0 = arith.constant 0 : index
    %c0_0 = arith.constant 0 : index
    %c0_1 = arith.constant 0 : index
    %0 = vector.load %arg1[%c0, %c0_0, %c0_1] : memref<1x4x256xf32, #tpu.memory_space<vmem>>, vector<1x4x256xf32>
    %c0_2 = arith.constant 0 : index
    %c0_3 = arith.constant 0 : index
    %c0_4 = arith.constant 0 : index
    %1 = vector.load %arg4[%c0_2, %c0_3, %c0_4] : memref<1x12x256xf32, #tpu.memory_space<vmem>>, vector<1x4x256xf32>
    tpu.vector_store %arg4[%c0_2, %c0_3, %c0_4], %0 {strides = array<i32>} : memref<1x12x256xf32, #tpu.memory_space<vmem>>, vector<1x4x256xf32>,
    %c0_5 = arith.constant 0 : index
    %c0_6 = arith.constant 0 : index
    %c0_7 = arith.constant 0 : index
    %2 = vector.load %arg2[%c0_5, %c0_6, %c0_7] : memref<1x3x192xf32, #tpu.memory_space<vmem>>, vector<1x3x192xf32>
    %c0_8 = arith.constant 0 : index
    %c4 = arith.constant 4 : index
    %c0_9 = arith.constant 0 : index
    %3 = vector.load %arg4[%c0_8, %c4, %c0_9] : memref<1x12x256xf32, #tpu.memory_space<vmem>>, vector<1x3x192xf32>
    tpu.vector_store %arg4[%c0_8, %c4, %c0_9], %2 {strides = array<i32>} : memref<1x12x256xf32, #tpu.memory_space<vmem>>, vector<1x3x192xf32>,
    %cst = arith.constant 0.000000e+00 : f32
    %4 = vector.broadcast %cst : f32 to vector<1x3x64xf32>
    %c0_10 = arith.constant 0 : index
    %c4_11 = arith.constant 4 : index
    %c192 = arith.constant 192 : index
    %5 = vector.load %arg4[%c0_10, %c4_11, %c192] : memref<1x12x256xf32, #tpu.memory_space<vmem>>, vector<1x3x64xf32>
    tpu.vector_store %arg4[%c0_10, %c4_11, %c192], %4 {strides = array<i32>} : memref<1x12x256xf32, #tpu.memory_space<vmem>>, vector<1x3x64xf32>,
    %c0_12 = arith.constant 0 : index
    %c0_13 = arith.constant 0 : index
    %c0_14 = arith.constant 0 : index
    %6 = vector.load %arg3[%c0_12, %c0_13, %c0_14] : memref<1x5x256xf32, #tpu.memory_space<vmem>>, vector<1x5x256xf32>
    %c0_15 = arith.constant 0 : index
    %c7 = arith.constant 7 : index
    %c0_16 = arith.constant 0 : index
    %7 = vector.load %arg4[%c0_15, %c7, %c0_16] : memref<1x12x256xf32, #tpu.memory_space<vmem>>, vector<1x5x256xf32>
    tpu.vector_store %arg4[%c0_15, %c7, %c0_16], %6 {strides = array<i32>} : memref<1x12x256xf32, #tpu.memory_space<vmem>>, vector<1x5x256xf32>,
    return
  }
  func.func @transform_0(%arg0: i32) -> (i32, i32, i32) {
    %c0_i32 = arith.constant 0 : i32
    %c0_i32_0 = arith.constant 0 : i32
    %c0_i32_1 = arith.constant 0 : i32
    return %arg0, %c0_i32, %c0_i32_0 : i32, i32, i32
  }
  func.func @transform_1(%arg0: i32) -> (i32, i32, i32) {
    %c0_i32 = arith.constant 0 : i32
    %c0_i32_0 = arith.constant 0 : i32
    %c0_i32_1 = arith.constant 0 : i32
    return %arg0, %c0_i32, %c0_i32_0 : i32, i32, i32
  }
  func.func @transform_2(%arg0: i32) -> (i32, i32, i32) {
    %c0_i32 = arith.constant 0 : i32
    %c0_i32_0 = arith.constant 0 : i32
    %c0_i32_1 = arith.constant 0 : i32
    return %arg0, %c0_i32, %c0_i32_0 : i32, i32, i32
  }
  func.func @transform_3(%arg0: i32) -> (i32, i32, i32) {
    %c0_i32 = arith.constant 0 : i32
    %c0_i32_0 = arith.constant 0 : i32
    %c0_i32_1 = arith.constant 0 : i32
    return %arg0, %c0_i32, %c0_i32_0 : i32, i32, i32
  }
}

</mosaic_0001>

<llo_original>
// kernel: tpu_custom_call.1
$region0: #{tpu_custom_call.1}
  #allocation0 [shape = 'u32[]', space=smem, size = 0x4, offset = 0x4, fixed_abs, tag = 'smem constant byte address 0x4 - core index']
  #allocation1 [shape = 'u32[144,128]{1,0:T(1,128)}', space=vmem, size = 0x12000, scoped, tag = 'internal scratch']
  %s0 = inlined_call_operand.vmem [shape: f32[2,4,256], index: 0, kind: input, shape index: {}]
  %s1 = inlined_call_operand.vmem [shape: f32[2,3,192], index: 1, kind: input, shape index: {}]
  %s2 = inlined_call_operand.vmem [shape: f32[2,5,256], index: 2, kind: input, shape index: {}]
  %s3 = inlined_call_operand.vmem [shape: f32[2,12,256], index: 3, kind: output, shape index: {}]
  %s4 = sld [smem:[#allocation0]]
  $region45: #{tpu_custom_call.1} parent=0
    _
  %s6 = ssub.s32 1, %s4
  %s7 = scalar_select 0, %s6, %s4
  loop: start=0, step=1, limit=4
  $region2: #{tpu_custom_call.1} parent=0 // loop_pre_header
    _
  $region3: #{tpu_custom_call.1} parent=0 // loop_header
    %s9 = sphi 0, %s13
    %p10 = scmp.ge.s32.totalorder %s9, 4
    %s19 = sphi 0, %s21
    %s22 = sphi 0, %s19
    %s23 = sphi 0, %s22
    %s39 = sphi 0, %s23
    %s45 = sphi 0, %s47
    %s48 = sphi 0, %s45
    %s49 = sphi 0, %s48
    %s65 = sphi 0, %s49
    %s71 = sphi 0, %s73
    %s74 = sphi 0, %s71
    %s75 = sphi 0, %s74
    %s91 = sphi 0, %s75
    %s97 = sphi 0, %s99
    %s100 = sphi 0, %s97
    %s101 = sphi 0, %s100
    %s117 = sphi 0, %s101
  $region4: #{tpu_custom_call.1} parent=0 // loop_header_branch
    %12 = sbr.rel (%p10) target = $region8
  $region5: #{tpu_custom_call.1} parent=0 // loop_body
    %s14 = ssub.s32 %s9, 1
    %s15 = ssub.s32 %s9, 2
    %s16 = sadd.s32 %s9, 1
    %s17 = ssub.s32 %s9, %s16
    %p18 = scmp.eq.s32.totalorder %s17, 0
    %s20 = sadd.s32 %s19, 1
    %s21 = scalar_select %p18, %s19, %s20
    %p24 = pneg %p18
    %p25 = scmp.eq.s32.totalorder %s9, 1
    %p26 = por %p24, %p25
    %p27 = scmp.ne.s32.totalorder %s19, %s22
    %p28 = scmp.eq.s32.totalorder %s9, 0
    %p29 = por %p27, %p28
    %p30 = scmp.ne.s32.totalorder %s19, %s22
    %p31 = scmp.eq.s32.totalorder %s14, 1
    %p32 = por %p30, %p31
    %p33 = scmp.ne.s32.totalorder %s22, %s23
    %p34 = scmp.eq.s32.totalorder %s14, 0
    %p35 = por %p33, %p34
    %p36 = scmp.ne.s32.totalorder %s22, %s23
    %p37 = scmp.eq.s32.totalorder %s15, 1
    %p38 = por %p36, %p37
    %p40 = scmp.ne.s32.totalorder %s23, %s39
    %p41 = scmp.eq.s32.totalorder %s15, 0
    %p42 = por %p40, %p41
    %s43 = ssub.s32 %s9, %s16
    %p44 = scmp.eq.s32.totalorder %s43, 0
    %s46 = sadd.s32 %s45, 1
    %s47 = scalar_select %p44, %s45, %s46
    %p50 = pneg %p44
    %p51 = scmp.eq.s32.totalorder %s9, 1
    %p52 = por %p50, %p51
    %p53 = scmp.ne.s32.totalorder %s45, %s48
    %p54 = scmp.eq.s32.totalorder %s9, 0
    %p55 = por %p53, %p54
    %p56 = scmp.ne.s32.totalorder %s45, %s48
    %p57 = scmp.eq.s32.totalorder %s14, 1
    %p58 = por %p56, %p57
    %p59 = scmp.ne.s32.totalorder %s48, %s49
    %p60 = scmp.eq.s32.totalorder %s14, 0
    %p61 = por %p59, %p60
    %p62 = scmp.ne.s32.totalorder %s48, %s49
    %p63 = scmp.eq.s32.totalorder %s15, 1
    %p64 = por %p62, %p63
    %p66 = scmp.ne.s32.totalorder %s49, %s65
    %p67 = scmp.eq.s32.totalorder %s15, 0
    %p68 = por %p66, %p67
    %s69 = ssub.s32 %s9, %s16
    %p70 = scmp.eq.s32.totalorder %s69, 0
    %s72 = sadd.s32 %s71, 1
    %s73 = scalar_select %p70, %s71, %s72
    %p76 = pneg %p70
    %p77 = scmp.eq.s32.totalorder %s9, 1
    %p78 = por %p76, %p77
    %p79 = scmp.ne.s32.totalorder %s71, %s74
    %p80 = scmp.eq.s32.totalorder %s9, 0
    %p81 = por %p79, %p80
    %p82 = scmp.ne.s32.totalorder %s71, %s74
    %p83 = scmp.eq.s32.totalorder %s14, 1
    %p84 = por %p82, %p83
    %p85 = scmp.ne.s32.totalorder %s74, %s75
    %p86 = scmp.eq.s32.totalorder %s14, 0
    %p87 = por %p85, %p86
    %p88 = scmp.ne.s32.totalorder %s74, %s75
    %p89 = scmp.eq.s32.totalorder %s15, 1
    %p90 = por %p88, %p89
    %p92 = scmp.ne.s32.totalorder %s75, %s91
    %p93 = scmp.eq.s32.totalorder %s15, 0
    %p94 = por %p92, %p93
    %s95 = ssub.s32 %s9, %s16
    %p96 = scmp.eq.s32.totalorder %s95, 0
    %s98 = sadd.s32 %s97, 1
    %s99 = scalar_select %p96, %s97, %s98
    %p102 = pneg %p96
    %p103 = scmp.eq.s32.totalorder %s9, 1
    %p104 = por %p102, %p103
    %p105 = scmp.ne.s32.totalorder %s97, %s100
    %p106 = scmp.eq.s32.totalorder %s9, 0
    %p107 = por %p105, %p106
    %p108 = scmp.ne.s32.totalorder %s97, %s100
    %p109 = scmp.eq.s32.totalorder %s14, 1
    %p110 = por %p108, %p109
    %p111 = scmp.ne.s32.totalorder %s100, %s101
    %p112 = scmp.eq.s32.totalorder %s14, 0
    %p113 = por %p111, %p112
    %p114 = scmp.ne.s32.totalorder %s100, %s101
    %p115 = scmp.eq.s32.totalorder %s15, 1
    %p116 = por %p114, %p115
    %p118 = scmp.ne.s32.totalorder %s101, %s117
    %p119 = scmp.eq.s32.totalorder %s15, 0
    %p120 = por %p118, %p119
    %p121 = scmp.le.s32.totalorder 1, %s9
    %p122 = scmp.lt.s32.totalorder %s9, 3
    %p123 = pnand %p121, %p122
    %p124 = pneg %p123
    // Predicated region
    $region9: #{tpu_custom_call.1} parent=5 // pred_check
      _
    $region10: #{tpu_custom_call.1} parent=5 // pred_check_branch
      %126 = sbr.rel (%p123) target = $region12
    $region11: #{tpu_custom_call.1} parent=5 // pred_region
      %s127 = ssub.s32 %s9, 1
    $region12: #{tpu_custom_call.1} parent=5 // pred_fallthru
      _
    %p128 = scmp.lt.s32.totalorder %s9, 2
    // Predicated region
    $region13: #{tpu_custom_call.1} parent=5 // pred_check
      %p129 = pneg %p128
    $region14: #{tpu_custom_call.1} parent=5 // pred_check_branch
      %131 = sbr.rel (%p129) target = $region16
    $region15: #{tpu_custom_call.1} parent=5 // pred_region
      // Predicated region
      $region17: #{tpu_custom_call.1} parent=15 // pred_check
        %p132 = pneg %p29
      $region18: #{tpu_custom_call.1} parent=15 // pred_check_branch
        %134 = sbr.rel (%p132) target = $region20
      $region19: #{tpu_custom_call.1} parent=15 // pred_region
        %p135 = scmp.lt.s32.totalorder %s9, 1
        %s136 = scalar_select %p135, %s9, 1
        %s137 = smul.addr %s136, 2
        %s138 = smul.addr %s137, 4
        %s139 = scalar_lea.vmem %s0, %s138
      $region20: #{tpu_custom_call.1} parent=15 // pred_fallthru
        _
      // Predicated region
      $region21: #{tpu_custom_call.1} parent=15 // pred_check
        %p140 = pneg %p55
      $region22: #{tpu_custom_call.1} parent=15 // pred_check_branch
        %142 = sbr.rel (%p140) target = $region24
      $region23: #{tpu_custom_call.1} parent=15 // pred_region
        %p143 = scmp.lt.s32.totalorder %s9, 1
        %s144 = scalar_select %p143, %s9, 1
        %s145 = smul.addr %s144, 2
        %s146 = smul.addr %s145, 4
        %s147 = scalar_lea.vmem %s1, %s146
      $region24: #{tpu_custom_call.1} parent=15 // pred_fallthru
        _
      // Predicated region
      $region25: #{tpu_custom_call.1} parent=15 // pred_check
        %p148 = pneg %p81
      $region26: #{tpu_custom_call.1} parent=15 // pred_check_branch
        %150 = sbr.rel (%p148) target = $region28
      $region27: #{tpu_custom_call.1} parent=15 // pred_region
        %p151 = scmp.lt.s32.totalorder %s9, 1
        %s152 = scalar_select %p151, %s9, 1
        %s153 = smul.addr %s152, 2
        %s154 = smul.addr %s153, 8
        %s155 = scalar_lea.vmem %s2, %s154
      $region28: #{tpu_custom_call.1} parent=15 // pred_fallthru
        _
    $region16: #{tpu_custom_call.1} parent=5 // pred_fallthru
      _
    %p156 = scmp.le.s32.totalorder 1, %s9
    %p157 = scmp.lt.s32.totalorder %s9, 3
    %p158 = pnand %p156, %p157
    %p159 = pneg %p158
    // Predicated region
    $region29: #{tpu_custom_call.1} parent=5 // pred_check
      _
    $region30: #{tpu_custom_call.1} parent=5 // pred_check_branch
      %161 = sbr.rel (%p158) target = $region32
    $region31: #{tpu_custom_call.1} parent=5 // pred_region
      %s162 = ssub.s32 %s9, 1
      %p163 = scmp.lt.s32.totalorder %s14, 1
      %s164 = scalar_select %p163, %s14, 1
      %s165 = smul.addr %s164, 2
      %s166 = smul.addr %s165, 4
      %s167 = scalar_lea.vmem %s0, %s166
      %p168 = pneg %p35
      %p169 = pneg %p32
      %p170 = scmp.lt.s32.totalorder %s14, 1
      %s171 = scalar_select %p170, %s14, 1
      %s172 = smul.addr %s171, 2
      %s173 = smul.addr %s172, 4
      %s174 = scalar_lea.vmem %s1, %s173
      %p175 = pneg %p61
      %p176 = pneg %p58
      %p177 = scmp.lt.s32.totalorder %s14, 1
      %s178 = scalar_select %p177, %s14, 1
      %s179 = smul.addr %s178, 2
      %s180 = smul.addr %s179, 8
      %s181 = scalar_lea.vmem %s2, %s180
      %p182 = pneg %p87
      %p183 = pneg %p84
      %p184 = pneg %p113
      %p185 = pneg %p110
      %p186 = scmp.lt.s32.totalorder %s14, 1
      %s187 = scalar_select %p186, %s14, 1
      %s188 = smul.addr %s187, 4
      %s189 = smul.addr %s188, 8
      %s190 = scalar_lea.vmem %s3, %s189
      %p191 = scmp.lt.s32.totalorder %s14, 1
      %s192 = scalar_select %p191, %s14, 1
      %s193 = smul.addr %s192, 2
      %s194 = smul.addr %s193, 4
      %s195 = scalar_lea.vmem %s0, %s194
      %p196 = scmp.lt.s32.totalorder %s14, 1
      %s197 = scalar_select %p196, %s14, 1
      %s198 = smul.addr %s197, 2
      %s199 = smul.addr %s198, 4
      %s200 = scalar_lea.vmem %s1, %s199
      %p201 = scmp.lt.s32.totalorder %s14, 1
      %s202 = scalar_select %p201, %s14, 1
      %s203 = smul.addr %s202, 2
      %s204 = smul.addr %s203, 8
      %s205 = scalar_lea.vmem %s2, %s204
      %p206 = scmp.lt.s32.totalorder %s14, 1
      %s207 = scalar_select %p206, %s14, 1
      %s208 = smul.addr %s207, 4
      %s209 = smul.addr %s208, 8
      %s210 = scalar_lea.vmem %s3, %s209
      %v211 = vld [vmem:[%s195] sm:$0xff]
      %v213 = vcombine.high %v211, %v211
      %215 = vst [vmem:[%s210] sm:$0xf] %v211
      %216 = vst [vmem:[%s210 + $0x8] sm:$0xf] %v213
      %v217 = vld [vmem:[%s200] sm:$0x77]
      %v219 = vcombine.low %v217, %v217
      %221 = vst [vmem:[%s210] sm:$0x70] %v219
      %vm222 = vcmask 522244
      %223 = vst.msk [vmem:[%s210 + $0x8] sm:$0x70] %vm222, %v217
      %vm224 = vcmask 1047044
      %225 = vst.msk [vmem:[%s210 + $0x8] sm:$0x70] %vm224, 0.0
      %v226 = vld [vmem:[%s205] sm:$0x1f]
      %v227 = vld [vmem:[%s205 + $0x8] sm:$0x1f]
      %v230 = vrot.slane %v226, 1
      %v231 = vrot.slane %v227, 1
      %234 = vst [vmem:[%s210] sm:$0x80] %v230
      %235 = vst [vmem:[%s210 + $0x8] sm:$0x80] %v231
      %236 = vst [vmem:[%s210 + $0x10] sm:$0xf] %v230
      %237 = vst [vmem:[%s210 + $0x18] sm:$0xf] %v231
      %p238 = scmp.lt.s32.totalorder %s14, 1
      %s239 = scalar_select %p238, %s14, 1
      %s240 = smul.addr %s239, 4
      %s241 = smul.addr %s240, 8
      %s242 = scalar_lea.vmem %s3, %s241
      // Predicated region
      $region33: #{tpu_custom_call.1} parent=31 // pred_check
        %p243 = pneg %p110
      $region34: #{tpu_custom_call.1} parent=31 // pred_check_branch
        %245 = sbr.rel (%p243) target = $region36
      $region35: #{tpu_custom_call.1} parent=31 // pred_region
        _
      $region36: #{tpu_custom_call.1} parent=31 // pred_fallthru
        _
    $region32: #{tpu_custom_call.1} parent=5 // pred_fallthru
      _
    %p246 = scmp.le.s32.totalorder 2, %s9
    // Predicated region
    $region37: #{tpu_custom_call.1} parent=5 // pred_check
      %p247 = pneg %p246
    $region38: #{tpu_custom_call.1} parent=5 // pred_check_branch
      %249 = sbr.rel (%p247) target = $region40
    $region39: #{tpu_custom_call.1} parent=5 // pred_region
      %s250 = ssub.s32 %s9, 2
      // Predicated region
      $region41: #{tpu_custom_call.1} parent=39 // pred_check
        %p251 = pneg %p116
      $region42: #{tpu_custom_call.1} parent=39 // pred_check_branch
        %253 = sbr.rel (%p251) target = $region44
      $region43: #{tpu_custom_call.1} parent=39 // pred_region
        %p254 = scmp.lt.s32.totalorder %s15, 1
        %s255 = scalar_select %p254, %s15, 1
        %s256 = smul.addr %s255, 4
        %s257 = smul.addr %s256, 8
        %s258 = scalar_lea.vmem %s3, %s257
      $region44: #{tpu_custom_call.1} parent=39 // pred_fallthru
        _
    $region40: #{tpu_custom_call.1} parent=5 // pred_fallthru
      _
  $region6: #{tpu_custom_call.1} parent=0 // loop_footer
    %s13 = sadd.s32 1, %s9
  $region7: #{tpu_custom_call.1} parent=0 // loop_footer_branch
    %8 = sbr.rel target = $region3
  $region8: #{tpu_custom_call.1} parent=0 // loop_exit
    _

</llo_original>
